<compile_context>
chip_gen: v7x
topology: tpu7x:2x2x1
jax: 0.10.0
libtpu: 0.0.40
codegen_flags: <defaults>
</compile_context>

<pallas_src>
import jax
import jax.numpy as jnp
from jax import lax
from jax.experimental import pallas as pl
from jax.experimental.pallas import tpu as pltpu


def _make_kernel(F, C, FT, Nt, Ns):
    """Per-grid-step kernel. Nt = Bt*T columns (b-major, t-minor), Ns = Bt*Seq."""

    def kernel(x_ref, w_ref, wp_ref, bias_ref, pool_ref, o_ref):
        xb = x_ref[0]                                   # (C, Nt)

        # --- im2col: FT lane-rotated copies stacked along sublanes.
        # Row index = k*C + c; column (b*T + t) of copy k holds x[b, c, t+k]
        # (columns t >= T-FT+1 wrap across batch segments and are masked later
        # by the pooling matrix, so their values never reach the output).
        rows = [xb]
        for k in range(1, FT):                          # FT small & static
            rows.append(jnp.concatenate([xb[:, k:], xb[:, :k]], axis=1))
        patches = jnp.concatenate(rows, axis=0)         # (FT*C, Nt)

        # --- fused temporal+spatial conv with BatchNorm folded in: one MXU op.
        y = jnp.dot(w_ref[...], patches, preferred_element_type=jnp.float32)
        y = y + bias_ref[:, 0:1]                        # (F, Nt)

        # --- ELU(alpha=1). Clamp the negative branch so the unselected exp
        #     stays finite (equivalent to expm1 on the selected branch).
        y = jnp.where(y > 0, y, jnp.exp(jnp.minimum(y, 0.0)) - 1.0)

        # --- AvgPool2d((1,pool),(1,stride)) as a block-diagonal matmul; it also
        #     zeros out the invalid conv-tail columns per batch segment.
        y = jnp.dot(y, pool_ref[...], preferred_element_type=jnp.float32)   # (F, Ns)

        # --- Dropout: identity in eval.  Projection 1x1 conv == matmul over F.
        y = jnp.dot(wp_ref[...], y, preferred_element_type=jnp.float32) + bias_ref[:, 1:2]

        # Lane-dense store: (F, Bt*Seq); 'b f s -> b s f' happens in the wrapper.
        o_ref[0] = y.astype(o_ref.dtype)

    return kernel


def patch_embedding(x, params, *, filter_time_length, pool_time_length,
                    stride_avg_pool, batch_block=None):
    """x: (B, n_channels, T) float32 -> (B, seq, n_filters_time) float32."""
    B, C, T = x.shape
    F, FT = params["w1"].shape
    assert FT == filter_time_length
    Tc = T - FT + 1
    Seq = (Tc - pool_time_length) // stride_avg_pool + 1

    # ---- wrapper-side algebra: fuse conv1+conv2, fold BatchNorm (inference) ----
    w1, b1 = params["w1"], params["b1"]                 # (F, FT), (F,)
    w2, b2 = params["w2"], params["b2"]                 # (F, F, C), (F,)
    s = params["gamma"] * lax.rsqrt(params["var"] + 1e-5)              # (F,)
    Wc = jnp.einsum("gfc,fk->gck", w2, w1)                             # (F, C, FT)
    bc = jnp.einsum("gfc,f->g", w2, b1) + b2                           # (F,)
    # rows of the fused weight ordered (k, c) to match the kernel's im2col
    Wmat = (s[:, None, None] * Wc).transpose(0, 2, 1).reshape(F, FT * C)
    b_fold = s * (bc - params["mean"]) + params["beta"]                # (F,)
    bias_pack = jnp.stack([b_fold, params["bp"]], axis=1)              # (F, 2)

    # ---- batch blocking: fold Bt batch elements into the matmul N dimension,
    #      keep >=2 grid steps when B>=2 so both v7x TensorCores get work. ----
    if batch_block is None:
        batch_block = max(1, -(-B // 2))
    Bt = min(batch_block, B)
    G = -(-B // Bt)
    Bpad = G * Bt
    if Bpad != B:
        x = jnp.concatenate([x, jnp.zeros((Bpad - B, C, T), x.dtype)], axis=0)
    # (Bpad, C, T) -> (G, C, Bt*T): per-step slab, columns b-major / t-minor.
    x3 = x.reshape(G, Bt, C, T).transpose(0, 2, 1, 3).reshape(G, C, Bt * T)

    # ---- block-diagonal average-pool matrix (Bt*T, Bt*Seq).  Column b*Seq+s
    #      averages rows b*T + s*stride .. + pool_len-1; invalid conv columns
    #      (t >= Tc) are never touched, so the im2col wraparound is masked. ----
    Nt, Ns = Bt * T, Bt * Seq
    row = jnp.arange(Nt)
    col = jnp.arange(Ns)
    row_b, row_t = row // T, row % T
    col_b, col_s = col // Seq, col % Seq
    start = col_s * stride_avg_pool
    pool_mat = (((row_b[:, None] == col_b[None, :])
                 & (row_t[:, None] >= start[None, :])
                 & (row_t[:, None] < (start + pool_time_length)[None, :]))
                .astype(jnp.float32) / float(pool_time_length))

    kernel = _make_kernel(F, C, FT, Nt, Ns)

    def shared(shape):
        return pl.BlockSpec(shape, lambda g, n=len(shape): (0,) * n)

    out = pl.pallas_call(
        kernel,
        out_shape=jax.ShapeDtypeStruct((G, F, Ns), jnp.float32),
        grid=(G,),
        in_specs=[
            pl.BlockSpec((1, C, Nt), lambda g: (g, 0, 0)),   # x slab
            shared((F, FT * C)),                             # fused conv+BN weight
            shared((F, F)),                                  # projection weight
            shared((F, 2)),                                  # packed biases
            shared((Nt, Ns)),                                # pooling matrix
        ],
        out_specs=pl.BlockSpec((1, F, Ns), lambda g: (g, 0, 0)),
        compiler_params=pltpu.CompilerParams(dimension_semantics=("parallel",)),
    )(x3, Wmat, params["wp"], bias_pack, pool_mat)

    # Lane-dense (g, F, Bt*Seq) -> (B, Seq, F): pure layout plumbing in XLA.
    out = out.reshape(G, F, Bt, Seq).transpose(0, 2, 3, 1).reshape(Bpad, Seq, F)
    return out[:B]


def reference(x, params, *, filter_time_length, pool_time_length, stride_avg_pool):
    """Plain-JAX reference mirroring the PyTorch module (eval mode)."""
    B, C, T = x.shape
    F, FT = params["w1"].shape
    Tc = T - FT + 1
    Seq = (Tc - pool_time_length) // stride_avg_pool + 1

    patches = jnp.stack([x[:, :, k:k + Tc] for k in range(FT)], axis=0)  # (FT,B,C,Tc)
    y1 = jnp.einsum("fk,kbct->bfct", params["w1"], patches) + params["b1"][None, :, None, None]
    y2 = jnp.einsum("fgc,bgct->bft", params["w2"], y1) + params["b2"][None, :, None]
    inv = lax.rsqrt(params["var"] + 1e-5)
    y3 = (y2 - params["mean"][None, :, None]) * (inv * params["gamma"])[None, :, None] \
         + params["beta"][None, :, None]
    y3 = jnp.where(y3 > 0, y3, jnp.exp(jnp.minimum(y3, 0.0)) - 1.0)      # ELU
    t_idx = jnp.arange(Tc)[:, None]
    start = jnp.arange(Seq)[None, :] * stride_avg_pool
    pool_mat = (((t_idx >= start) & (t_idx < start + pool_time_length))
                .astype(jnp.float32) / float(pool_time_length))
    y4 = jnp.einsum("bft,ts->bfs", y3, pool_mat)
    y5 = jnp.einsum("fg,bgs->bfs", params["wp"], y4) + params["bp"][None, :, None]
    return jnp.transpose(y5, (0, 2, 1))


if __name__ == "__main__":
    # Small, module-consistent hyperparameters.
    B = 2                     # batch
    n_channels = 4            # EEG channels (conv "height")
    T = 64                    # time samples (conv "width")
    n_filters_time = 8        # embedding size
    filter_time_length = 5
    pool_time_length = 8
    stride_avg_pool = 4
    drop_prob = 0.5           # dropout is identity in eval mode

    key = jax.random.PRNGKey(0)
    k_x, k_p = jax.random.split(key)
    # PyTorch-equivalent input is (B, 1, n_channels, T); kernel layout squeezes dim 1.
    x_nchw = jax.random.normal(k_x, (B, 1, n_channels, T), jnp.float32)
    x = x_nchw[:, 0]          # (B, n_channels, T)

    pk = jax.random.split(k_p, 6)
    F = n_filters_time
    params = {
        "w1": 0.2 * jax.random.normal(pk[0], (F, filter_time_length), jnp.float32),
        "b1": 0.1 * jax.random.normal(pk[1], (F,), jnp.float32),
        "w2": 0.2 * jax.random.normal(pk[2], (F, F, n_channels), jnp.float32),
        "b2": 0.1 * jax.random.normal(pk[3], (F,), jnp.float32),
        # BatchNorm2d (inference-mode running statistics, deterministic init).
        "gamma": 1.0 + 0.05 * jnp.arange(F, dtype=jnp.float32),
        "beta": 0.01 * jnp.arange(F, dtype=jnp.float32),
        "mean": jnp.zeros((F,), jnp.float32),
        "var": jnp.ones((F,), jnp.float32),
        # projection 1x1 conv
        "wp": 0.2 * jax.random.normal(pk[4], (F, F), jnp.float32),
        "bp": 0.1 * jax.random.normal(pk[5], (F,), jnp.float32),
    }

    out = patch_embedding(x, params,
                          filter_time_length=filter_time_length,
                          pool_time_length=pool_time_length,
                          stride_avg_pool=stride_avg_pool)
    out = jax.block_until_ready(out)

    ref = reference(x, params,
                    filter_time_length=filter_time_length,
                    pool_time_length=pool_time_length,
                    stride_avg_pool=stride_avg_pool)

    Tc = T - filter_time_length + 1
    Seq = (Tc - pool_time_length) // stride_avg_pool + 1
    assert out.shape == (B, Seq, n_filters_time), out.shape
    assert jnp.allclose(out, ref, rtol=1e-4, atol=1e-4), float(jnp.max(jnp.abs(out - ref)))

    print("KERNEL_OK")
</pallas_src>

<mosaic_0001>
module attributes {stable_mosaic.version = 11 : i64} {
  func.func @kernel(%arg0: i32, %arg1: memref<1x4x64xf32, #tpu.memory_space<vmem>>, %arg2: memref<8x20xf32, #tpu.memory_space<vmem>>, %arg3: memref<8x8xf32, #tpu.memory_space<vmem>>, %arg4: memref<8x2xf32, #tpu.memory_space<vmem>>, %arg5: memref<64x14xf32, #tpu.memory_space<vmem>>, %arg6: memref<1x8x14xf32, #tpu.memory_space<vmem>>) attributes {dimension_semantics = [#tpu.dimension_semantics<parallel>], iteration_bounds = array<i64: 2>, scalar_prefetch = 0 : i64, scratch_operands = 0 : i64, tpu.core_type = #tpu.core_type<tc>, window_params = [{transform_indices = @transform_0, window_bounds = array<i64: 1, 4, 64>}, {pipeline_mode = #tpu.pipeline_mode<synchronous>, transform_indices = @transform_1, window_bounds = array<i64: 8, 20>}, {pipeline_mode = #tpu.pipeline_mode<synchronous>, transform_indices = @transform_2, window_bounds = array<i64: 8, 8>}, {pipeline_mode = #tpu.pipeline_mode<synchronous>, transform_indices = @transform_3, window_bounds = array<i64: 8, 2>}, {pipeline_mode = #tpu.pipeline_mode<synchronous>, transform_indices = @transform_4, window_bounds = array<i64: 64, 14>}, {transform_indices = @transform_5, window_bounds = array<i64: 1, 8, 14>}]} {
    %c0 = arith.constant 0 : index
    %c0_0 = arith.constant 0 : index
    %c0_1 = arith.constant 0 : index
    %0 = vector.load %arg1[%c0, %c0_0, %c0_1] : memref<1x4x64xf32, #tpu.memory_space<vmem>>, vector<1x4x64xf32>
    %1 = vector.shape_cast %0 : vector<1x4x64xf32> to vector<4x64xf32>
    %2 = vector.extract_strided_slice %1 {offsets = [0, 1], sizes = [4, 63], strides = [1, 1]} : vector<4x64xf32> to vector<4x63xf32>
    %3 = vector.extract_strided_slice %1 {offsets = [0, 0], sizes = [4, 1], strides = [1, 1]} : vector<4x64xf32> to vector<4x1xf32>
    %4 = tpu.concatenate %2, %3 in 1 : vector<4x63xf32>, vector<4x1xf32> -> vector<4x64xf32>
    %5 = vector.extract_strided_slice %1 {offsets = [0, 2], sizes = [4, 62], strides = [1, 1]} : vector<4x64xf32> to vector<4x62xf32>
    %6 = vector.extract_strided_slice %1 {offsets = [0, 0], sizes = [4, 2], strides = [1, 1]} : vector<4x64xf32> to vector<4x2xf32>
    %7 = tpu.concatenate %5, %6 in 1 : vector<4x62xf32>, vector<4x2xf32> -> vector<4x64xf32>
    %8 = vector.extract_strided_slice %1 {offsets = [0, 3], sizes = [4, 61], strides = [1, 1]} : vector<4x64xf32> to vector<4x61xf32>
    %9 = vector.extract_strided_slice %1 {offsets = [0, 0], sizes = [4, 3], strides = [1, 1]} : vector<4x64xf32> to vector<4x3xf32>
    %10 = tpu.concatenate %8, %9 in 1 : vector<4x61xf32>, vector<4x3xf32> -> vector<4x64xf32>
    %11 = vector.extract_strided_slice %1 {offsets = [0, 4], sizes = [4, 60], strides = [1, 1]} : vector<4x64xf32> to vector<4x60xf32>
    %12 = vector.extract_strided_slice %1 {offsets = [0, 0], sizes = [4, 4], strides = [1, 1]} : vector<4x64xf32> to vector<4x4xf32>
    %13 = tpu.concatenate %11, %12 in 1 : vector<4x60xf32>, vector<4x4xf32> -> vector<4x64xf32>
    %14 = tpu.concatenate %1, %4, %7, %10, %13 in 0 : vector<4x64xf32>, vector<4x64xf32>, vector<4x64xf32>, vector<4x64xf32>, vector<4x64xf32> -> vector<20x64xf32>
    %c0_2 = arith.constant 0 : index
    %c0_3 = arith.constant 0 : index
    %15 = vector.load %arg2[%c0_2, %c0_3] : memref<8x20xf32, #tpu.memory_space<vmem>>, vector<8x20xf32>
    %cst = arith.constant dense<0.000000e+00> : vector<8x64xf32>
    %16 = tpu.matmul %15, %14, %cst {dimension_numbers = #tpu.dot_dimension_numbers<[1], [0], [0], [1], [0, 0, 1, 1], [], []>} : vector<8x20xf32>, vector<20x64xf32>, vector<8x64xf32> -> vector<8x64xf32>
    %c0_4 = arith.constant 0 : index
    %c0_5 = arith.constant 0 : index
    %17 = vector.load %arg4[%c0_4, %c0_5] : memref<8x2xf32, #tpu.memory_space<vmem>>, vector<8x1xf32>
    %18 = vector.broadcast %17 : vector<8x1xf32> to vector<8x64xf32>
    %19 = arith.addf %16, %18 : vector<8x64xf32>
    %cst_6 = arith.constant 0.000000e+00 : f32
    %20 = vector.broadcast %cst_6 : f32 to vector<8x64xf32>
    %21 = arith.cmpf ogt, %19, %20 : vector<8x64xf32>
    %cst_7 = arith.constant 0.000000e+00 : f32
    %22 = vector.broadcast %cst_7 : f32 to vector<8x64xf32>
    %23 = arith.minimumf %19, %22 : vector<8x64xf32>
    %24 = math.exp %23 : vector<8x64xf32>
    %cst_8 = arith.constant 1.000000e+00 : f32
    %25 = vector.broadcast %cst_8 : f32 to vector<8x64xf32>
    %26 = arith.subf %24, %25 : vector<8x64xf32>
    %27 = arith.select %21, %19, %26 : vector<8x64xi1>, vector<8x64xf32>
    %c0_9 = arith.constant 0 : index
    %c0_10 = arith.constant 0 : index
    %28 = vector.load %arg5[%c0_9, %c0_10] : memref<64x14xf32, #tpu.memory_space<vmem>>, vector<64x14xf32>
    %cst_11 = arith.constant dense<0.000000e+00> : vector<8x14xf32>
    %29 = tpu.matmul %27, %28, %cst_11 {dimension_numbers = #tpu.dot_dimension_numbers<[1], [0], [0], [1], [0, 0, 1, 1], [], []>} : vector<8x64xf32>, vector<64x14xf32>, vector<8x14xf32> -> vector<8x14xf32>
    %c0_12 = arith.constant 0 : index
    %c0_13 = arith.constant 0 : index
    %30 = vector.load %arg3[%c0_12, %c0_13] : memref<8x8xf32, #tpu.memory_space<vmem>>, vector<8x8xf32>
    %cst_14 = arith.constant dense<0.000000e+00> : vector<8x14xf32>
    %31 = tpu.matmul %30, %29, %cst_14 {dimension_numbers = #tpu.dot_dimension_numbers<[1], [0], [0], [1], [0, 0, 1, 1], [], []>} : vector<8x8xf32>, vector<8x14xf32>, vector<8x14xf32> -> vector<8x14xf32>
    %c0_15 = arith.constant 0 : index
    %c1 = arith.constant 1 : index
    %32 = vector.load %arg4[%c0_15, %c1] : memref<8x2xf32, #tpu.memory_space<vmem>>, vector<8x1xf32>
    %33 = vector.broadcast %32 : vector<8x1xf32> to vector<8x14xf32>
    %34 = arith.addf %31, %33 : vector<8x14xf32>
    %c0_16 = arith.constant 0 : index
    %c0_17 = arith.constant 0 : index
    %c0_18 = arith.constant 0 : index
    %35 = vector.load %arg6[%c0_16, %c0_17, %c0_18] : memref<1x8x14xf32, #tpu.memory_space<vmem>>, vector<1x8x14xf32>
    %36 = vector.shape_cast %35 : vector<1x8x14xf32> to vector<8x14xf32>
    %37 = vector.shape_cast %34 : vector<8x14xf32> to vector<1x8x14xf32>
    tpu.vector_store %arg6[%c0_16, %c0_17, %c0_18], %37 {strides = array<i32>} : memref<1x8x14xf32, #tpu.memory_space<vmem>>, vector<1x8x14xf32>,
    return
  }
  func.func @transform_0(%arg0: i32) -> (i32, i32, i32) {
    %c0_i32 = arith.constant 0 : i32
    %c0_i32_0 = arith.constant 0 : i32
    %c0_i32_1 = arith.constant 0 : i32
    return %arg0, %c0_i32, %c0_i32_0 : i32, i32, i32
  }
  func.func @transform_1(%arg0: i32) -> (i32, i32) {
    %c0_i32 = arith.constant 0 : i32
    %c0_i32_0 = arith.constant 0 : i32
    %c0_i32_1 = arith.constant 0 : i32
    return %c0_i32, %c0_i32_0 : i32, i32
  }
  func.func @transform_2(%arg0: i32) -> (i32, i32) {
    %c0_i32 = arith.constant 0 : i32
    %c0_i32_0 = arith.constant 0 : i32
    %c0_i32_1 = arith.constant 0 : i32
    return %c0_i32, %c0_i32_0 : i32, i32
  }
  func.func @transform_3(%arg0: i32) -> (i32, i32) {
    %c0_i32 = arith.constant 0 : i32
    %c0_i32_0 = arith.constant 0 : i32
    %c0_i32_1 = arith.constant 0 : i32
    return %c0_i32, %c0_i32_0 : i32, i32
  }
  func.func @transform_4(%arg0: i32) -> (i32, i32) {
    %c0_i32 = arith.constant 0 : i32
    %c0_i32_0 = arith.constant 0 : i32
    %c0_i32_1 = arith.constant 0 : i32
    return %c0_i32, %c0_i32_0 : i32, i32
  }
  func.func @transform_5(%arg0: i32) -> (i32, i32, i32) {
    %c0_i32 = arith.constant 0 : i32
    %c0_i32_0 = arith.constant 0 : i32
    %c0_i32_1 = arith.constant 0 : i32
    return %arg0, %c0_i32, %c0_i32_0 : i32, i32, i32
  }
}

</mosaic_0001>

<llo_original>
// kernel: tpu_custom_call.1
$region0: #{tpu_custom_call.1}
  #allocation0 [shape = 'u32[]', space=smem, size = 0x4, offset = 0x4, fixed_abs, tag = 'smem constant byte address 0x4 - core index']
  #allocation1 [shape = 'u32[144,128]{1,0:T(1,128)}', space=vmem, size = 0x12000, scoped, tag = 'internal scratch']
  %s0 = inlined_call_operand.vmem [shape: f32[2,4,64], index: 0, kind: input, shape index: {}]
  %s1 = inlined_call_operand.vmem [shape: f32[8,20], index: 1, kind: input, shape index: {}]
  %s2 = inlined_call_operand.vmem [shape: f32[8,8], index: 2, kind: input, shape index: {}]
  %s3 = inlined_call_operand.vmem [shape: f32[8,2], index: 3, kind: input, shape index: {}]
  %s4 = inlined_call_operand.vmem [shape: f32[64,14], index: 4, kind: input, shape index: {}]
  %s5 = inlined_call_operand.hbm [shape: f32[2,8,14], index: 5, kind: output, shape index: {}]
  %s6 = sld [smem:[#allocation0]]
  $region53: #{tpu_custom_call.1} parent=0
    _
  %s8 = ssub.s32 1, %s6
  %s9 = scalar_select 0, %s8, %s6
  $region1: #{tpu_custom_call.1} parent=0
    #allocation2 [shape = 'u8[8192]{0}', space=vmem, size = 0x2000, scoped, tag = 'output window, operand 0']
    #allocation3 [shape = 's32[2]{0}', space=sflag, size = 0x8, scoped, tag = 'scoped memory for tpu_custom_call.1']
    %10 = vsyncpa [#allocation3], 0
    %s11 = scalar_lea.sflag [#allocation3], 1
    %12 = vsyncpa %s11, 0
    loop: start=0, step=1, limit=4
    $region2: #{tpu_custom_call.1} parent=1 // loop_pre_header
      _
    $region3: #{tpu_custom_call.1} parent=1 // loop_header
      %s14 = sphi 0, %s18
      %p15 = scmp.ge.s32.totalorder %s14, 4
      %s24 = sphi 0, %s26
      %s27 = sphi 0, %s24
      %s28 = sphi 0, %s27
      %s44 = sphi 0, %s28
      %s48 = sphi 0, %s48
      %s50 = sphi 0, %s48
      %s51 = sphi 0, %s50
      %s65 = sphi 0, %s51
      %s69 = sphi 0, %s69
      %s71 = sphi 0, %s69
      %s72 = sphi 0, %s71
      %s86 = sphi 0, %s72
      %s90 = sphi 0, %s90
      %s92 = sphi 0, %s90
      %s93 = sphi 0, %s92
      %s107 = sphi 0, %s93
      %s111 = sphi 0, %s111
      %s113 = sphi 0, %s111
      %s114 = sphi 0, %s113
      %s128 = sphi 0, %s114
      %s134 = sphi 0, %s136
      %s137 = sphi 0, %s134
      %s138 = sphi 0, %s137
      %s154 = sphi 0, %s138
    $region4: #{tpu_custom_call.1} parent=1 // loop_header_branch
      %17 = sbr.rel (%p15) target = $region8
    $region5: #{tpu_custom_call.1} parent=1 // loop_body
      %s19 = ssub.s32 %s14, 1
      %s20 = ssub.s32 %s14, 2
      %s21 = sadd.s32 %s14, 1
      %s22 = ssub.s32 %s14, %s21
      %p23 = scmp.eq.s32.totalorder %s22, 0
      %s25 = sadd.s32 %s24, 1
      %s26 = scalar_select %p23, %s24, %s25
      %p29 = pneg %p23
      %p30 = scmp.eq.s32.totalorder %s14, 1
      %p31 = por %p29, %p30
      %p32 = scmp.ne.s32.totalorder %s24, %s27
      %p33 = scmp.eq.s32.totalorder %s14, 0
      %p34 = por %p32, %p33
      %p35 = scmp.ne.s32.totalorder %s24, %s27
      %p36 = scmp.eq.s32.totalorder %s19, 1
      %p37 = por %p35, %p36
      %p38 = scmp.ne.s32.totalorder %s27, %s28
      %p39 = scmp.eq.s32.totalorder %s19, 0
      %p40 = por %p38, %p39
      %p41 = scmp.ne.s32.totalorder %s27, %s28
      %p42 = scmp.eq.s32.totalorder %s20, 1
      %p43 = por %p41, %p42
      %p45 = scmp.ne.s32.totalorder %s28, %s44
      %p46 = scmp.eq.s32.totalorder %s20, 0
      %p47 = por %p45, %p46
      %s49 = sadd.s32 %s48, 1
      %p52 = scmp.eq.s32.totalorder %s14, 1
      %p53 = scmp.ne.s32.totalorder %s48, %s50
      %p54 = scmp.eq.s32.totalorder %s14, 0
      %p55 = por %p53, %p54
      %p56 = scmp.ne.s32.totalorder %s48, %s50
      %p57 = scmp.eq.s32.totalorder %s19, 1
      %p58 = por %p56, %p57
      %p59 = scmp.ne.s32.totalorder %s50, %s51
      %p60 = scmp.eq.s32.totalorder %s19, 0
      %p61 = por %p59, %p60
      %p62 = scmp.ne.s32.totalorder %s50, %s51
      %p63 = scmp.eq.s32.totalorder %s20, 1
      %p64 = por %p62, %p63
      %p66 = scmp.ne.s32.totalorder %s51, %s65
      %p67 = scmp.eq.s32.totalorder %s20, 0
      %p68 = por %p66, %p67
      %s70 = sadd.s32 %s69, 1
      %p73 = scmp.eq.s32.totalorder %s14, 1
      %p74 = scmp.ne.s32.totalorder %s69, %s71
      %p75 = scmp.eq.s32.totalorder %s14, 0
      %p76 = por %p74, %p75
      %p77 = scmp.ne.s32.totalorder %s69, %s71
      %p78 = scmp.eq.s32.totalorder %s19, 1
      %p79 = por %p77, %p78
      %p80 = scmp.ne.s32.totalorder %s71, %s72
      %p81 = scmp.eq.s32.totalorder %s19, 0
      %p82 = por %p80, %p81
      %p83 = scmp.ne.s32.totalorder %s71, %s72
      %p84 = scmp.eq.s32.totalorder %s20, 1
      %p85 = por %p83, %p84
      %p87 = scmp.ne.s32.totalorder %s72, %s86
      %p88 = scmp.eq.s32.totalorder %s20, 0
      %p89 = por %p87, %p88
      %s91 = sadd.s32 %s90, 1
      %p94 = scmp.eq.s32.totalorder %s14, 1
      %p95 = scmp.ne.s32.totalorder %s90, %s92
      %p96 = scmp.eq.s32.totalorder %s14, 0
      %p97 = por %p95, %p96
      %p98 = scmp.ne.s32.totalorder %s90, %s92
      %p99 = scmp.eq.s32.totalorder %s19, 1
      %p100 = por %p98, %p99
      %p101 = scmp.ne.s32.totalorder %s92, %s93
      %p102 = scmp.eq.s32.totalorder %s19, 0
      %p103 = por %p101, %p102
      %p104 = scmp.ne.s32.totalorder %s92, %s93
      %p105 = scmp.eq.s32.totalorder %s20, 1
      %p106 = por %p104, %p105
      %p108 = scmp.ne.s32.totalorder %s93, %s107
      %p109 = scmp.eq.s32.totalorder %s20, 0
      %p110 = por %p108, %p109
      %s112 = sadd.s32 %s111, 1
      %p115 = scmp.eq.s32.totalorder %s14, 1
      %p116 = scmp.ne.s32.totalorder %s111, %s113
      %p117 = scmp.eq.s32.totalorder %s14, 0
      %p118 = por %p116, %p117
      %p119 = scmp.ne.s32.totalorder %s111, %s113
      %p120 = scmp.eq.s32.totalorder %s19, 1
      %p121 = por %p119, %p120
      %p122 = scmp.ne.s32.totalorder %s113, %s114
      %p123 = scmp.eq.s32.totalorder %s19, 0
      %p124 = por %p122, %p123
      %p125 = scmp.ne.s32.totalorder %s113, %s114
      %p126 = scmp.eq.s32.totalorder %s20, 1
      %p127 = por %p125, %p126
      %p129 = scmp.ne.s32.totalorder %s114, %s128
      %p130 = scmp.eq.s32.totalorder %s20, 0
      %p131 = por %p129, %p130
      %s132 = ssub.s32 %s14, %s21
      %p133 = scmp.eq.s32.totalorder %s132, 0
      %s135 = sadd.s32 %s134, 1
      %s136 = scalar_select %p133, %s134, %s135
      %p139 = pneg %p133
      %p140 = scmp.eq.s32.totalorder %s14, 1
      %p141 = por %p139, %p140
      %p142 = scmp.ne.s32.totalorder %s134, %s137
      %p143 = scmp.eq.s32.totalorder %s14, 0
      %p144 = por %p142, %p143
      %p145 = scmp.ne.s32.totalorder %s134, %s137
      %p146 = scmp.eq.s32.totalorder %s19, 1
      %p147 = por %p145, %p146
      %p148 = scmp.ne.s32.totalorder %s137, %s138
      %p149 = scmp.eq.s32.totalorder %s19, 0
      %p150 = por %p148, %p149
      %p151 = scmp.ne.s32.totalorder %s137, %s138
      %p152 = scmp.eq.s32.totalorder %s20, 1
      %p153 = por %p151, %p152
      %p155 = scmp.ne.s32.totalorder %s138, %s154
      %p156 = scmp.eq.s32.totalorder %s20, 0
      %p157 = por %p155, %p156
      %p158 = scmp.le.s32.totalorder 1, %s14
      %p159 = scmp.lt.s32.totalorder %s14, 3
      %p160 = pnand %p158, %p159
      %p161 = pneg %p160
      // Predicated region
      $region9: #{tpu_custom_call.1} parent=5 // pred_check
        _
      $region10: #{tpu_custom_call.1} parent=5 // pred_check_branch
        %163 = sbr.rel (%p160) target = $region12
      $region11: #{tpu_custom_call.1} parent=5 // pred_region
        %s164 = ssub.s32 %s14, 1
        // Predicated region
        $region13: #{tpu_custom_call.1} parent=11 // pred_check
          %p165 = pneg %p61
        $region14: #{tpu_custom_call.1} parent=11 // pred_check_branch
          %167 = sbr.rel (%p165) target = $region16
        $region15: #{tpu_custom_call.1} parent=11 // pred_region
          _
        $region16: #{tpu_custom_call.1} parent=11 // pred_fallthru
          _
        // Predicated region
        $region17: #{tpu_custom_call.1} parent=11 // pred_check
          %p168 = pneg %p82
        $region18: #{tpu_custom_call.1} parent=11 // pred_check_branch
          %170 = sbr.rel (%p168) target = $region20
        $region19: #{tpu_custom_call.1} parent=11 // pred_region
          _
        $region20: #{tpu_custom_call.1} parent=11 // pred_fallthru
          _
        // Predicated region
        $region21: #{tpu_custom_call.1} parent=11 // pred_check
          %p171 = pneg %p103
        $region22: #{tpu_custom_call.1} parent=11 // pred_check_branch
          %173 = sbr.rel (%p171) target = $region24
        $region23: #{tpu_custom_call.1} parent=11 // pred_region
          _
        $region24: #{tpu_custom_call.1} parent=11 // pred_fallthru
          _
        // Predicated region
        $region25: #{tpu_custom_call.1} parent=11 // pred_check
          %p174 = pneg %p124
        $region26: #{tpu_custom_call.1} parent=11 // pred_check_branch
          %176 = sbr.rel (%p174) target = $region28
        $region27: #{tpu_custom_call.1} parent=11 // pred_region
          _
        $region28: #{tpu_custom_call.1} parent=11 // pred_fallthru
          _
      $region12: #{tpu_custom_call.1} parent=5 // pred_fallthru
        _
      %p177 = scmp.lt.s32.totalorder %s14, 2
      // Predicated region
      $region29: #{tpu_custom_call.1} parent=5 // pred_check
        %p178 = pneg %p177
      $region30: #{tpu_custom_call.1} parent=5 // pred_check_branch
        %180 = sbr.rel (%p178) target = $region32
      $region31: #{tpu_custom_call.1} parent=5 // pred_region
        // Predicated region
        $region33: #{tpu_custom_call.1} parent=31 // pred_check
          %p181 = pneg %p34
        $region34: #{tpu_custom_call.1} parent=31 // pred_check_branch
          %183 = sbr.rel (%p181) target = $region36
        $region35: #{tpu_custom_call.1} parent=31 // pred_region
          %p184 = scmp.lt.s32.totalorder %s14, 1
          %s185 = scalar_select %p184, %s14, 1
          %s186 = smul.addr %s185, 4
          %s187 = scalar_lea.vmem %s0, %s186
        $region36: #{tpu_custom_call.1} parent=31 // pred_fallthru
          _
      $region32: #{tpu_custom_call.1} parent=5 // pred_fallthru
        _
      %p188 = scmp.le.s32.totalorder 1, %s14
      %p189 = scmp.lt.s32.totalorder %s14, 3
      %p190 = pnand %p188, %p189
      %p191 = pneg %p190
      // Predicated region
      $region37: #{tpu_custom_call.1} parent=5 // pred_check
        _
      $region38: #{tpu_custom_call.1} parent=5 // pred_check_branch
        %193 = sbr.rel (%p190) target = $region40
      $region39: #{tpu_custom_call.1} parent=5 // pred_region
        %s194 = ssub.s32 %s14, 1
        %p195 = scmp.lt.s32.totalorder %s19, 1
        %s196 = scalar_select %p195, %s19, 1
        %s197 = smul.addr %s196, 4
        %s198 = scalar_lea.vmem %s0, %s197
        %p199 = pneg %p40
        %p200 = pneg %p37
        %p201 = pneg %p61
        %p202 = pneg %p58
        %p203 = pneg %p82
        %p204 = pneg %p79
        %p205 = pneg %p103
        %p206 = pneg %p100
        %p207 = pneg %p124
        %p208 = pneg %p121
        %p209 = pneg %p150
        %p210 = pneg %p147
        %s211 = sand.u32 %s137, 1
        %s212 = scalar_lea.sflag [#allocation3], %s211
        %s213 = sand.u32 %s137, 1
        %s214 = smul.addr %s213, 8
        %s215 = scalar_lea.vmem [#allocation2], %s214
        %p216 = scmp.lt.s32.totalorder %s19, 1
        %s217 = scalar_select %p216, %s19, 1
        %s218 = smul.addr %s217, 4
        %s219 = scalar_lea.vmem %s0, %s218
        %v220 = vld [vmem:[%s219] sm:$0xf]
        %222 = vrot.lane.b32.xlu0 %v220, 127
        %v223 = vpop.permute.xlu0 %222
        %225 = vrot.lane.b32.xlu0 %v220, 63
        %v226 = vpop.permute.xlu0 %225
        %vm228 = vcmask 515072
        %v229 = vsel %vm228, %v223, %v226
        %230 = vrot.lane.b32.xlu0 %v220, 126
        %v231 = vpop.permute.xlu0 %230
        %233 = vrot.lane.b32.xlu0 %v220, 62
        %v234 = vpop.permute.xlu0 %233
        %vm236 = vcmask 506880
        %v237 = vsel %vm236, %v231, %v234
        %238 = vrot.lane.b32.xlu0 %v220, 125
        %v239 = vpop.permute.xlu0 %238
        %241 = vrot.lane.b32.xlu0 %v220, 61
        %v242 = vpop.permute.xlu0 %241
        %vm244 = vcmask 498688
        %v245 = vsel %vm244, %v239, %v242
        %246 = vrot.lane.b32.xlu0 %v220, 124
        %v247 = vpop.permute.xlu0 %246
        %249 = vrot.lane.b32.xlu0 %v220, 60
        %v250 = vpop.permute.xlu0 %249
        %vm252 = vcmask 490496
        %v253 = vsel %vm252, %v247, %v250
        %v255 = vrot.slane %v229, 4
        %v258 = vrot.slane %v245, 4
        %vm260 = vcmask 1043456
        %v261 = vsel %vm260, %v220, %v255
        %v262 = vsel %vm260, %v237, %v258
        %v263 = vld [vmem:[%s1] sm:$0xff]
        %v264 = vld [vmem:[%s3] sm:$0xff]
        %266 = vset.pattern.permute.xlu0 0
        %267 = vperm.xlu0 %266, %v264
        %v268 = vpop.permute.xlu0 %267
        %vm270 = vcmask 162816
        %v272 = vsel %vm270, %v263, 0
        %v275 = vsel %vm260, %v253, 0
        %277 = vmatprep.subr.mxu0 0.0
        %278 = vmatpush1.msra.mxu0 %v261
        %279 = vmatprep.subr.mxu0 0.0
        %280 = vmatpush1.msra.mxu0 %v262
        %281 = vmatprep.subr.mxu0 0.0
        %282 = vmatpush1.msra.mxu0 %v275
        %283 = vmatprep.subr.mxu0 0.0
        %284 = vmatpush1.msra.mxu0 0.0
        %285 = vmatprep.subr.mxu0 0.0
        %286 = vmatpush1.msra.mxu0 0.0
        %287 = vmatprep.subr.mxu0 0.0
        %288 = vmatpush1.msra.mxu0 0.0
        %289 = vmatprep.subr.mxu0 0.0
        %290 = vmatpush1.msra.mxu0 0.0
        %291 = vmatprep.subr.mxu0 0.0
        %292 = vmatpush1.msra.mxu0 0.0
        %293 = vmatprep.subr.mxu0 0.0
        %294 = vmatpush1.msra.mxu0 0.0
        %295 = vmatprep.subr.mxu0 0.0
        %296 = vmatpush1.msra.mxu0 0.0
        %297 = vmatprep.subr.mxu0 0.0
        %298 = vmatpush1.msra.mxu0 0.0
        %299 = vmatprep.subr.mxu0 0.0
        %300 = vmatpush1.msra.mxu0 0.0
        %301 = vmatprep.subr.mxu0 0.0
        %302 = vmatpush1.msra.mxu0 0.0
        %303 = vmatprep.subr.mxu0 0.0
        %304 = vmatpush1.msra.mxu0 0.0
        %305 = vmatprep.subr.mxu0 0.0
        %306 = vmatpush1.msra.mxu0 0.0
        %307 = vmatprep.subr.mxu0 0.0
        %308 = vmatpush1.msra.mxu0 0.0
        %309 = vmatprep.subr.mxu0 0.0
        %310 = vmatpush1.msra.mxu0 0.0
        %311 = vmatprep.subr.mxu0 0.0
        %312 = vmatpush1.msra.mxu0 0.0
        %313 = vmatprep.subr.mxu0 0.0
        %314 = vmatpush1.msra.mxu0 0.0
        %315 = vmatprep.subr.mxu0 0.0
        %316 = vmatpush1.msra.mxu0 0.0
        %317 = vmatprep.subr.mxu0 0.0
        %318 = vmatpush1.msra.mxu0 0.0
        %319 = vmatprep.subr.mxu0 0.0
        %320 = vmatpush1.msra.mxu0 0.0
        %321 = vmatprep.subr.mxu0 0.0
        %322 = vmatpush1.msra.mxu0 0.0
        %323 = vmatprep.subr.mxu0 0.0
        %324 = vmatpush1.msra.mxu0 0.0
        %325 = vmatprep.subr.mxu0 0.0
        %326 = vmatpush1.msra.mxu0 0.0
        %327 = vmatprep.subr.mxu0 0.0
        %328 = vmatpush1.msra.mxu0 0.0
        %329 = vmatprep.subr.mxu0 0.0
        %330 = vmatpush1.msra.mxu0 0.0
        %331 = vmatprep.subr.mxu0 0.0
        %332 = vmatpush1.msra.mxu0 0.0
        %333 = vmatprep.subr.mxu0 0.0
        %334 = vmatpush1.msra.mxu0 0.0
        %335 = vmatprep.subr.mxu0 0.0
        %336 = vmatpush1.msra.mxu0 0.0
        %337 = vmatprep.subr.mxu0 0.0
        %338 = vmatpush1.msra.mxu0 0.0
        %339 = vmatprep.subr.mxu0 0.0
        %340 = vmatpush1.msra.mxu0 0.0
        %341 = vmatprep.mubr.f32.mxu0 0.0
        %342 = vmatmul.mubr.f32.gmra.mrb[0].mxu0 %v272
        %v343 = vpop.f32.mrb[0].mxu0
        %v344 = vadd.f32 %v268, %v343
        %v345 = vpop.f32.mrb[0].mxu0
        %346 = vdwg.mxu0
        %vm347 = vcmp.gt.f32.partialorder %v344, 0.0
        %v348 = vmin.f32 %v344, 0.0
        %v349 = vmul.f32 %v348, 1.442695
        %v350 = vpow.pop %v349
        %v351 = vsub.f32 %v350, 1.0
        %v352 = vsel %vm347, %v344, %v351
        %v353 = vld [vmem:[%s4] sm:$0xff]
        %v354 = vld [vmem:[%s4 + $0x8] sm:$0xff]
        %v355 = vld [vmem:[%s4 + $0x10] sm:$0xff]
        %v356 = vld [vmem:[%s4 + $0x18] sm:$0xff]
        %v357 = vld [vmem:[%s4 + $0x20] sm:$0xff]
        %v358 = vld [vmem:[%s4 + $0x28] sm:$0xff]
        %v359 = vld [vmem:[%s4 + $0x30] sm:$0xff]
        %v360 = vld [vmem:[%s4 + $0x38] sm:$0xff]
        %vm361 = vcmask 523264
        %v363 = vsel %vm361, %v352, 0
        %365 = vmatprep.subr.mxu0 0.0
        %366 = vmatpush1.msra.mxu0 %v353
        %367 = vmatprep.subr.mxu0 0.0
        %368 = vmatpush1.msra.mxu0 %v354
        %369 = vmatprep.subr.mxu0 0.0
        %370 = vmatpush1.msra.mxu0 %v355
        %371 = vmatprep.subr.mxu0 0.0
        %372 = vmatpush1.msra.mxu0 %v356
        %373 = vmatprep.subr.mxu0 0.0
        %374 = vmatpush1.msra.mxu0 %v357
        %375 = vmatprep.subr.mxu0 0.0
        %376 = vmatpush1.msra.mxu0 %v358
        %377 = vmatprep.subr.mxu0 0.0
        %378 = vmatpush1.msra.mxu0 %v359
        %379 = vmatprep.subr.mxu0 0.0
        %380 = vmatpush1.msra.mxu0 %v360
        %381 = vmatprep.subr.mxu0 0.0
        %382 = vmatpush1.msra.mxu0 0.0
        %383 = vmatprep.subr.mxu0 0.0
        %384 = vmatpush1.msra.mxu0 0.0
        %385 = vmatprep.subr.mxu0 0.0
        %386 = vmatpush1.msra.mxu0 0.0
        %387 = vmatprep.subr.mxu0 0.0
        %388 = vmatpush1.msra.mxu0 0.0
        %389 = vmatprep.subr.mxu0 0.0
        %390 = vmatpush1.msra.mxu0 0.0
        %391 = vmatprep.subr.mxu0 0.0
        %392 = vmatpush1.msra.mxu0 0.0
        %393 = vmatprep.subr.mxu0 0.0
        %394 = vmatpush1.msra.mxu0 0.0
        %395 = vmatprep.subr.mxu0 0.0
        %396 = vmatpush1.msra.mxu0 0.0
        %397 = vmatprep.subr.mxu0 0.0
        %398 = vmatpush1.msra.mxu0 0.0
        %399 = vmatprep.subr.mxu0 0.0
        %400 = vmatpush1.msra.mxu0 0.0
        %401 = vmatprep.subr.mxu0 0.0
        %402 = vmatpush1.msra.mxu0 0.0
        %403 = vmatprep.subr.mxu0 0.0
        %404 = vmatpush1.msra.mxu0 0.0
        %405 = vmatprep.subr.mxu0 0.0
        %406 = vmatpush1.msra.mxu0 0.0
        %407 = vmatprep.subr.mxu0 0.0
        %408 = vmatpush1.msra.mxu0 0.0
        %409 = vmatprep.subr.mxu0 0.0
        %410 = vmatpush1.msra.mxu0 0.0
        %411 = vmatprep.subr.mxu0 0.0
        %412 = vmatpush1.msra.mxu0 0.0
        %413 = vmatprep.subr.mxu0 0.0
        %414 = vmatpush1.msra.mxu0 0.0
        %415 = vmatprep.subr.mxu0 0.0
        %416 = vmatpush1.msra.mxu0 0.0
        %417 = vmatprep.subr.mxu0 0.0
        %418 = vmatpush1.msra.mxu0 0.0
        %419 = vmatprep.subr.mxu0 0.0
        %420 = vmatpush1.msra.mxu0 0.0
        %421 = vmatprep.subr.mxu0 0.0
        %422 = vmatpush1.msra.mxu0 0.0
        %423 = vmatprep.subr.mxu0 0.0
        %424 = vmatpush1.msra.mxu0 0.0
        %425 = vmatprep.subr.mxu0 0.0
        %426 = vmatpush1.msra.mxu0 0.0
        %427 = vmatprep.subr.mxu0 0.0
        %428 = vmatpush1.msra.mxu0 0.0
        %429 = vmatprep.mubr.f32.mxu0 0.0
        %430 = vmatmul.mubr.f32.gmra.mrb[0].mxu0 %v363
        %v431 = vpop.f32.mrb[0].mxu0
        %v432 = vadd.f32 0.0, %v431
        %v433 = vpop.f32.mrb[0].mxu0
        %434 = vdwg.mxu0
        %v435 = vld [vmem:[%s2] sm:$0xff]
        %436 = vset.pattern.permute.xlu0 1
        %437 = vperm.xlu0 %436, %v264
        %v438 = vpop.permute.xlu0 %437
        %vm440 = vcmask 64512
        %v442 = vsel %vm440, %v435, 0
        %444 = vmatprep.subr.mxu0 0.0
        %445 = vmatpush1.msra.mxu0 %v432
        %446 = vmatprep.subr.mxu0 0.0
        %447 = vmatpush1.msra.mxu0 0.0
        %448 = vmatprep.subr.mxu0 0.0
        %449 = vmatpush1.msra.mxu0 0.0
        %450 = vmatprep.subr.mxu0 0.0
        %451 = vmatpush1.msra.mxu0 0.0
        %452 = vmatprep.subr.mxu0 0.0
        %453 = vmatpush1.msra.mxu0 0.0
        %454 = vmatprep.subr.mxu0 0.0
        %455 = vmatpush1.msra.mxu0 0.0
        %456 = vmatprep.subr.mxu0 0.0
        %457 = vmatpush1.msra.mxu0 0.0
        %458 = vmatprep.subr.mxu0 0.0
        %459 = vmatpush1.msra.mxu0 0.0
        %460 = vmatprep.subr.mxu0 0.0
        %461 = vmatpush1.msra.mxu0 0.0
        %462 = vmatprep.subr.mxu0 0.0
        %463 = vmatpush1.msra.mxu0 0.0
        %464 = vmatprep.subr.mxu0 0.0
        %465 = vmatpush1.msra.mxu0 0.0
        %466 = vmatprep.subr.mxu0 0.0
        %467 = vmatpush1.msra.mxu0 0.0
        %468 = vmatprep.subr.mxu0 0.0
        %469 = vmatpush1.msra.mxu0 0.0
        %470 = vmatprep.subr.mxu0 0.0
        %471 = vmatpush1.msra.mxu0 0.0
        %472 = vmatprep.subr.mxu0 0.0
        %473 = vmatpush1.msra.mxu0 0.0
        %474 = vmatprep.subr.mxu0 0.0
        %475 = vmatpush1.msra.mxu0 0.0
        %476 = vmatprep.subr.mxu0 0.0
        %477 = vmatpush1.msra.mxu0 0.0
        %478 = vmatprep.subr.mxu0 0.0
        %479 = vmatpush1.msra.mxu0 0.0
        %480 = vmatprep.subr.mxu0 0.0
        %481 = vmatpush1.msra.mxu0 0.0
        %482 = vmatprep.subr.mxu0 0.0
        %483 = vmatpush1.msra.mxu0 0.0
        %484 = vmatprep.subr.mxu0 0.0
        %485 = vmatpush1.msra.mxu0 0.0
        %486 = vmatprep.subr.mxu0 0.0
        %487 = vmatpush1.msra.mxu0 0.0
        %488 = vmatprep.subr.mxu0 0.0
        %489 = vmatpush1.msra.mxu0 0.0
        %490 = vmatprep.subr.mxu0 0.0
        %491 = vmatpush1.msra.mxu0 0.0
        %492 = vmatprep.subr.mxu0 0.0
        %493 = vmatpush1.msra.mxu0 0.0
        %494 = vmatprep.subr.mxu0 0.0
        %495 = vmatpush1.msra.mxu0 0.0
        %496 = vmatprep.subr.mxu0 0.0
        %497 = vmatpush1.msra.mxu0 0.0
        %498 = vmatprep.subr.mxu0 0.0
        %499 = vmatpush1.msra.mxu0 0.0
        %500 = vmatprep.subr.mxu0 0.0
        %501 = vmatpush1.msra.mxu0 0.0
        %502 = vmatprep.subr.mxu0 0.0
        %503 = vmatpush1.msra.mxu0 0.0
        %504 = vmatprep.subr.mxu0 0.0
        %505 = vmatpush1.msra.mxu0 0.0
        %506 = vmatprep.subr.mxu0 0.0
        %507 = vmatpush1.msra.mxu0 0.0
        %508 = vmatprep.mubr.f32.mxu0 0.0
        %509 = vmatmul.mubr.f32.gmra.mrb[0].mxu0 %v442
        %v510 = vpop.f32.mrb[0].mxu0
        %v511 = vadd.f32 %v438, %v510
        %v512 = vpop.f32.mrb[0].mxu0
        %513 = vdwg.mxu0
        %vm514 = vcmask 113664
        %515 = vst.msk [vmem:[%s215] sm:$0xff] %vm514, %v511
        %s516 = sand.u32 %s137, 1
        %s517 = scalar_lea.sflag [#allocation3], %s516
        %s518 = sand.u32 %s137, 1
        %s519 = smul.addr %s518, 8
        %s520 = scalar_lea.vmem [#allocation2], %s519
        // Predicated region
        $region41: #{tpu_custom_call.1} parent=39 // pred_check
          %p521 = pneg %p147
        $region42: #{tpu_custom_call.1} parent=39 // pred_check_branch
          %523 = sbr.rel (%p521) target = $region44
        $region43: #{tpu_custom_call.1} parent=39 // pred_region
          %s525 = ssub.s32 128, 128
          %526 = vsyncadd %s517, %s525
          %s527 = smul.addr %s19, 128
          %s528 = scalar_lea.hbm %s5, %s527
          %s530 = sshll.u32 %s520, 4
          %s531 = int_to_ptr.vmem [resolvable:$true] %s530
          %533 = dma.vmem_to_hbm [thread:$0]  %s531, 128, %s528, %s517
        $region44: #{tpu_custom_call.1} parent=39 // pred_fallthru
          _
      $region40: #{tpu_custom_call.1} parent=5 // pred_fallthru
        _
      %p534 = scmp.le.s32.totalorder 2, %s14
      // Predicated region
      $region45: #{tpu_custom_call.1} parent=5 // pred_check
        %p535 = pneg %p534
      $region46: #{tpu_custom_call.1} parent=5 // pred_check_branch
        %537 = sbr.rel (%p535) target = $region48
      $region47: #{tpu_custom_call.1} parent=5 // pred_region
        %s538 = ssub.s32 %s14, 2
        // Predicated region
        $region49: #{tpu_custom_call.1} parent=47 // pred_check
          %p539 = pneg %p153
        $region50: #{tpu_custom_call.1} parent=47 // pred_check_branch
          %541 = sbr.rel (%p539) target = $region52
        $region51: #{tpu_custom_call.1} parent=47 // pred_region
          %s542 = sand.u32 %s138, 1
          %s543 = scalar_lea.sflag [#allocation3], %s542
          %s544 = sand.u32 %s138, 1
          %s545 = smul.addr %s544, 8
          %s546 = scalar_lea.vmem [#allocation2], %s545
          %547 = dma.done %s543, 128
        $region52: #{tpu_custom_call.1} parent=47 // pred_fallthru
          _
      $region48: #{tpu_custom_call.1} parent=5 // pred_fallthru
        _
    $region6: #{tpu_custom_call.1} parent=1 // loop_footer
      %s18 = sadd.s32 1, %s14
    $region7: #{tpu_custom_call.1} parent=1 // loop_footer_branch
      %13 = sbr.rel target = $region3
    $region8: #{tpu_custom_call.1} parent=1 // loop_exit
      _
    %548 = vsyncpa [#allocation3], 1
    %s549 = scalar_lea.sflag [#allocation3], 1
    %550 = vsyncpa %s549, 1

</llo_original>
